<compile_context>
chip_gen: v7x
topology: tpu7x:2x2x1
jax: 0.10.0
libtpu: 0.0.40
codegen_flags: <defaults>
</compile_context>

<pallas_src>
import functools

import jax
import jax.numpy as jnp
from jax import lax
from jax.experimental import pallas as pl
from jax.experimental.pallas import tpu as pltpu


def _embeddings_kernel(ids_ref, word_ref, pos_ref, gamma_ref, beta_ref, out_ref, *,
                       eps, pos_resident, tiles_per_seq):
    v = word_ref.shape[0]
    tn = ids_ref.shape[1]
    ids = ids_ref[...]                              # (1, TN) int32, lane-major

    # One-hot built as (V, TN): sublane-broadcast of the lane-major ids row vs a sublane iota
    # (no XLU transpose of ids); contract lhs dim 0 against the table on the MXU, f32 accumulate.
    # 0/1 is exact in the table dtype, so bf16 tables keep the per-row gather exact.
    oh = (ids == lax.broadcasted_iota(jnp.int32, (v, tn), 0)).astype(word_ref.dtype)
    emb = lax.dot_general(oh, word_ref[...], (((0,), (0,)), ((), ())),
                          preferred_element_type=jnp.float32)        # (TN, H) f32

    if pos_resident:
        # Resident (pos_len, H) slab: slice this tile's contiguous rows in VMEM (no per-tile DMA).
        off = pl.multiple_of((pl.program_id(0) % tiles_per_seq) * tn, 128)
        pos = pos_ref[pl.ds(off, tn), :]
    else:
        pos = pos_ref[...]                          # per-tile pipelined (TN, H) block
    emb = emb + pos.astype(jnp.float32)

    # One-pass LayerNorm over hidden dim, f32 (safe at embedding magnitudes; one fewer live temp).
    mean = jnp.mean(emb, axis=-1, keepdims=True)
    var = jnp.mean(emb * emb, axis=-1, keepdims=True) - mean * mean
    out = (emb - mean) * lax.rsqrt(var + eps) * gamma_ref[...] + beta_ref[...]

    # TODO(synk): nn.Dropout is identity in eval mode; no RNG/dropout mask applied.
    out_ref[...] = out.astype(out_ref.dtype)


def _pick_tile(limit, total):
    """Largest multiple of 128 <= limit that divides total (0 if none)."""
    start = (min(limit, total) // 128) * 128
    for cand in range(start, 0, -128):
        if total % cand == 0:
            return cand
    return 0


def splicebert_embeddings(input_ids, word_table, pos_table, tok_table, gamma, beta, *,
                          eps=1e-12, past_key_values_length=0, token_tile=512,
                          out_dtype=None, vmem_limit_bytes=48 * 1024 * 1024,
                          pos_resident_bytes=8 * 1024 * 1024):
    """input_ids: (B, S) int.  Returns (B, S, H) in out_dtype (default: word_table.dtype)."""
    b, s = input_ids.shape
    v, h = word_table.shape
    n = b * s
    out_dtype = word_table.dtype if out_dtype is None else out_dtype

    # token_type_ids are all zeros in this forward -> fold tok_table[0] into the word table once.
    word_eff = word_table + tok_table[0][None, :].astype(word_table.dtype)

    # Absolute positions are a contiguous arange: a plain slice of the table, no gather needed.
    pos_slice = pos_table[past_key_values_length:past_key_values_length + s]

    # Pick a 128-aligned token tile that divides S so a tile never straddles a sequence and its
    # positions are one contiguous slice.
    tn = _pick_tile(token_tile, s)
    if tn:
        pos_slab = pos_slice                              # (S, H): each sequence reuses it
    else:
        # Ragged S: replicate positions over the batch so every 128-aligned tile of the flattened
        # token axis still sees a contiguous slice, and keep a real (pipelined) grid.
        pos_slab = jnp.tile(pos_slice, (b, 1))            # (N, H)
        tn = _pick_tile(token_tile, n)
    if tn == 0:
        # TODO(synk): N not a multiple of 128 -- last-resort single full-extent tile (no pipelining).
        tn = n
    pos_len = pos_slab.shape[0]
    tiles_per_seq = pos_len // tn

    # Keep the position slab resident in VMEM when it is small (SpliceBERT-scale S, H always is).
    pos_resident = pos_len * h * pos_slab.dtype.itemsize <= pos_resident_bytes

    ids_flat = input_ids.astype(jnp.int32).reshape(1, n)
    gamma2d = jnp.asarray(gamma, jnp.float32).reshape(1, h)
    beta2d = jnp.asarray(beta, jnp.float32).reshape(1, h)

    if pos_resident:
        pos_spec = pl.BlockSpec((pos_len, h), lambda i: (0, 0), pipeline_mode=pl.Buffered(1))
    else:
        pos_spec = pl.BlockSpec((tn, h), lambda i: (i % tiles_per_seq, 0))

    grid_spec = pltpu.PrefetchScalarGridSpec(
        num_scalar_prefetch=0,
        grid=(n // tn,),
        in_specs=[
            pl.BlockSpec((1, tn), lambda i: (0, i)),                             # ids for this tile
            pl.BlockSpec((v, h), lambda i: (0, 0), pipeline_mode=pl.Buffered(1)),  # word(+tok) table
            pos_spec,                                                            # positions
            pl.BlockSpec((1, h), lambda i: (0, 0), pipeline_mode=pl.Buffered(1)),  # LN gamma
            pl.BlockSpec((1, h), lambda i: (0, 0), pipeline_mode=pl.Buffered(1)),  # LN beta
        ],
        out_specs=pl.BlockSpec((tn, h), lambda i: (i, 0)),
    )

    out_flat = pl.pallas_call(
        functools.partial(_embeddings_kernel, eps=eps, pos_resident=pos_resident,
                          tiles_per_seq=tiles_per_seq),
        out_shape=jax.ShapeDtypeStruct((n, h), out_dtype),
        grid_spec=grid_spec,
        compiler_params=pltpu.CompilerParams(
            dimension_semantics=("parallel",),       # independent token tiles (megacore sharding)
            vmem_limit_bytes=vmem_limit_bytes,       # 48 MiB: fits v7x's 64 MiB, roomy on v5e/v6e
        ),
    )(ids_flat, word_eff, pos_slab, gamma2d, beta2d)

    return out_flat.reshape(b, s, h)


def _reference(input_ids, word_table, pos_table, tok_table, gamma, beta, eps=1e-12):
    b, s = input_ids.shape
    we = word_table[input_ids]
    tte = tok_table[jnp.zeros((b, s), dtype=jnp.int32)]
    pe = pos_table[jnp.arange(s)][None, :, :]
    emb = (we + tte) + pe
    mean = jnp.mean(emb, axis=-1, keepdims=True)
    var = jnp.mean((emb - mean) ** 2, axis=-1, keepdims=True)
    return (emb - mean) / jnp.sqrt(var + eps) * gamma + beta


if __name__ == "__main__":
    # Small SpliceBert-like config
    vocab_size = 32
    hidden_size = 128
    max_position_embeddings = 512
    type_vocab_size = 2
    pad_token_id = 0
    layer_norm_eps = 1e-12

    batch, seq_len = 2, 256          # N = 512 tokens -> tn=256, 2 grid tiles, resident pos slab

    key = jax.random.PRNGKey(0)
    k_word, k_pos, k_tok, k_ids = jax.random.split(key, 4)

    word_table = 0.02 * jax.random.normal(k_word, (vocab_size, hidden_size), jnp.float32)
    word_table = word_table.at[pad_token_id].set(0.0)   # padding_idx row is zero in nn.Embedding
    pos_table = 0.02 * jax.random.normal(k_pos, (max_position_embeddings, hidden_size), jnp.float32)
    tok_table = 0.02 * jax.random.normal(k_tok, (type_vocab_size, hidden_size), jnp.float32)
    gamma = jnp.ones((hidden_size,), jnp.float32)
    beta = jnp.zeros((hidden_size,), jnp.float32)

    input_ids = jax.random.randint(k_ids, (batch, seq_len), 0, vocab_size, dtype=jnp.int32)

    # f32 path (resident position slab): matches the PyTorch module's numerics (strict check).
    out = splicebert_embeddings(input_ids, word_table, pos_table, tok_table, gamma, beta,
                                eps=layer_norm_eps)
    out = jax.block_until_ready(out)
    ref = _reference(input_ids, word_table, pos_table, tok_table, gamma, beta, eps=layer_norm_eps)
    assert out.shape == (batch, seq_len, hidden_size)
    assert jnp.allclose(out, ref, atol=1e-4, rtol=1e-4)

    # bf16 fast path: tables stay bf16 (half HBM read + half resident VMEM, bf16 MXU), bf16 out.
    out_bf16 = splicebert_embeddings(
        input_ids,
        word_table.astype(jnp.bfloat16), pos_table.astype(jnp.bfloat16),
        tok_table.astype(jnp.bfloat16), gamma, beta,
        eps=layer_norm_eps)
    out_bf16 = jax.block_until_ready(out_bf16)
    assert out_bf16.dtype == jnp.bfloat16
    assert jnp.allclose(out_bf16.astype(jnp.float32), ref, atol=5e-2, rtol=5e-2)

    # Ragged-S path: S=192 is not a 128 multiple -> positions tiled over batch, tn re-derived as a
    # 128-aligned divisor of N (keeps pipelining and a multi-step grid instead of one giant tile).
    rg_ids = jax.random.randint(jax.random.PRNGKey(1), (batch, 192), 0, vocab_size, dtype=jnp.int32)
    out_rg = splicebert_embeddings(rg_ids, word_table, pos_table, tok_table, gamma, beta,
                                   eps=layer_norm_eps, token_tile=128)
    out_rg = jax.block_until_ready(out_rg)
    ref_rg = _reference(rg_ids, word_table, pos_table, tok_table, gamma, beta, eps=layer_norm_eps)
    assert jnp.allclose(out_rg, ref_rg, atol=1e-4, rtol=1e-4)

    print("KERNEL_OK")
</pallas_src>

<mosaic_0001>
module attributes {stable_mosaic.version = 11 : i64} {
  func.func @_embeddings_kernel(%arg0: i32, %arg1: memref<1x256xi32, #tpu.memory_space<vmem>>, %arg2: memref<32x128xf32, #tpu.memory_space<vmem>>, %arg3: memref<256x128xf32, #tpu.memory_space<vmem>>, %arg4: memref<1x128xf32, #tpu.memory_space<vmem>>, %arg5: memref<1x128xf32, #tpu.memory_space<vmem>>, %arg6: memref<256x128xf32, #tpu.memory_space<vmem>>) attributes {dimension_semantics = [#tpu.dimension_semantics<parallel>], iteration_bounds = array<i64: 2>, scalar_prefetch = 0 : i64, scratch_operands = 0 : i64, tpu.core_type = #tpu.core_type<tc>, window_params = [{transform_indices = @transform_0, window_bounds = array<i64: 1, 256>}, {pipeline_mode = #tpu.pipeline_mode<synchronous>, transform_indices = @transform_1, window_bounds = array<i64: 32, 128>}, {pipeline_mode = #tpu.pipeline_mode<synchronous>, transform_indices = @transform_2, window_bounds = array<i64: 256, 128>}, {pipeline_mode = #tpu.pipeline_mode<synchronous>, transform_indices = @transform_3, window_bounds = array<i64: 1, 128>}, {pipeline_mode = #tpu.pipeline_mode<synchronous>, transform_indices = @transform_4, window_bounds = array<i64: 1, 128>}, {transform_indices = @transform_5, window_bounds = array<i64: 256, 128>}]} {
    %c0 = arith.constant 0 : index
    %c0_0 = arith.constant 0 : index
    %0 = vector.load %arg1[%c0, %c0_0] : memref<1x256xi32, #tpu.memory_space<vmem>>, vector<1x256xi32>
    %1 = tpu.iota {dimensions = array<i32: 0>} : vector<32x256xi32>
    %2 = vector.broadcast %0 : vector<1x256xi32> to vector<32x256xi32>
    %3 = arith.cmpi eq, %2, %1 : vector<32x256xi32>
    %4 = arith.extui %3 : vector<32x256xi1> to vector<32x256xi32>
    %5 = arith.sitofp %4 : vector<32x256xi32> to vector<32x256xf32>
    %c0_1 = arith.constant 0 : index
    %c0_2 = arith.constant 0 : index
    %6 = vector.load %arg2[%c0_1, %c0_2] : memref<32x128xf32, #tpu.memory_space<vmem>>, vector<32x128xf32>
    %cst = arith.constant dense<0.000000e+00> : vector<256x128xf32>
    %7 = tpu.matmul %5, %6, %cst {dimension_numbers = #tpu.dot_dimension_numbers<[0], [0], [1], [1], [0, 1, 1, 1], [], []>} : vector<32x256xf32>, vector<32x128xf32>, vector<256x128xf32> -> vector<256x128xf32>
    %c1_i32 = arith.constant 1 : i32
    %c0_i32 = arith.constant 0 : i32
    %8 = arith.cmpi eq, %c1_i32, %c0_i32 : i32
    %c1_i32_3 = arith.constant 1 : i32
    %9 = arith.select %8, %c1_i32_3, %c1_i32 : i32
    %10 = arith.remsi %arg0, %9 : i32
    %c0_i32_4 = arith.constant 0 : i32
    %11 = arith.cmpi ne, %10, %c0_i32_4 : i32
    %c0_i32_5 = arith.constant 0 : i32
    %12 = arith.cmpi slt, %10, %c0_i32_5 : i32
    %c0_i32_6 = arith.constant 0 : i32
    %13 = arith.cmpi slt, %9, %c0_i32_6 : i32
    %14 = arith.xori %12, %13 : i1
    %15 = arith.andi %14, %11 : i1
    %16 = arith.addi %10, %9 : i32
    %17 = arith.select %15, %16, %10 : i32
    %c256_i32 = arith.constant 256 : i32
    %18 = arith.muli %17, %c256_i32 : i32
    %19 = tpu.assume_multiple %18, 128 : i32
    %20 = arith.index_cast %19 : i32 to index
    %c0_7 = arith.constant 0 : index
    %21 = vector.load %arg3[%20, %c0_7] : memref<256x128xf32, #tpu.memory_space<vmem>>, vector<256x128xf32>
    %22 = arith.addf %7, %21 : vector<256x128xf32>
    %cst_8 = arith.constant dense<0.000000e+00> : vector<256xf32>
    %23 = vector.multi_reduction <add>, %22, %cst_8 [1] : vector<256x128xf32> to vector<256xf32>
    %24 = vector.shape_cast %23 : vector<256xf32> to vector<256x1xf32>
    %cst_9 = arith.constant 1.280000e+02 : f32
    %25 = vector.broadcast %cst_9 : f32 to vector<256x1xf32>
    %26 = arith.divf %24, %25 : vector<256x1xf32>
    %27 = arith.mulf %22, %22 : vector<256x128xf32>
    %cst_10 = arith.constant dense<0.000000e+00> : vector<256xf32>
    %28 = vector.multi_reduction <add>, %27, %cst_10 [1] : vector<256x128xf32> to vector<256xf32>
    %29 = vector.shape_cast %28 : vector<256xf32> to vector<256x1xf32>
    %cst_11 = arith.constant 1.280000e+02 : f32
    %30 = vector.broadcast %cst_11 : f32 to vector<256x1xf32>
    %31 = arith.divf %29, %30 : vector<256x1xf32>
    %32 = arith.mulf %26, %26 : vector<256x1xf32>
    %33 = arith.subf %31, %32 : vector<256x1xf32>
    %34 = vector.broadcast %26 : vector<256x1xf32> to vector<256x128xf32>
    %35 = arith.subf %22, %34 : vector<256x128xf32>
    %cst_12 = arith.constant 9.99999996E-13 : f32
    %36 = vector.broadcast %cst_12 : f32 to vector<256x1xf32>
    %37 = arith.addf %33, %36 : vector<256x1xf32>
    %38 = math.rsqrt %37 : vector<256x1xf32>
    %39 = vector.broadcast %38 : vector<256x1xf32> to vector<256x128xf32>
    %40 = arith.mulf %35, %39 : vector<256x128xf32>
    %c0_13 = arith.constant 0 : index
    %c0_14 = arith.constant 0 : index
    %41 = vector.load %arg4[%c0_13, %c0_14] : memref<1x128xf32, #tpu.memory_space<vmem>>, vector<1x128xf32>
    %42 = vector.broadcast %41 : vector<1x128xf32> to vector<256x128xf32>
    %43 = arith.mulf %40, %42 : vector<256x128xf32>
    %c0_15 = arith.constant 0 : index
    %c0_16 = arith.constant 0 : index
    %44 = vector.load %arg5[%c0_15, %c0_16] : memref<1x128xf32, #tpu.memory_space<vmem>>, vector<1x128xf32>
    %45 = vector.broadcast %44 : vector<1x128xf32> to vector<256x128xf32>
    %46 = arith.addf %43, %45 : vector<256x128xf32>
    %c0_17 = arith.constant 0 : index
    %c0_18 = arith.constant 0 : index
    %47 = vector.load %arg6[%c0_17, %c0_18] : memref<256x128xf32, #tpu.memory_space<vmem>>, vector<256x128xf32>
    tpu.vector_store %arg6[%c0_17, %c0_18], %46 {strides = array<i32>} : memref<256x128xf32, #tpu.memory_space<vmem>>, vector<256x128xf32>,
    return
  }
  func.func @transform_0(%arg0: i32) -> (i32, i32) {
    %c0_i32 = arith.constant 0 : i32
    %c0_i32_0 = arith.constant 0 : i32
    return %c0_i32, %arg0 : i32, i32
  }
  func.func @transform_1(%arg0: i32) -> (i32, i32) {
    %c0_i32 = arith.constant 0 : i32
    %c0_i32_0 = arith.constant 0 : i32
    %c0_i32_1 = arith.constant 0 : i32
    return %c0_i32, %c0_i32_0 : i32, i32
  }
  func.func @transform_2(%arg0: i32) -> (i32, i32) {
    %c0_i32 = arith.constant 0 : i32
    %c0_i32_0 = arith.constant 0 : i32
    %c0_i32_1 = arith.constant 0 : i32
    return %c0_i32, %c0_i32_0 : i32, i32
  }
  func.func @transform_3(%arg0: i32) -> (i32, i32) {
    %c0_i32 = arith.constant 0 : i32
    %c0_i32_0 = arith.constant 0 : i32
    %c0_i32_1 = arith.constant 0 : i32
    return %c0_i32, %c0_i32_0 : i32, i32
  }
  func.func @transform_4(%arg0: i32) -> (i32, i32) {
    %c0_i32 = arith.constant 0 : i32
    %c0_i32_0 = arith.constant 0 : i32
    %c0_i32_1 = arith.constant 0 : i32
    return %c0_i32, %c0_i32_0 : i32, i32
  }
  func.func @transform_5(%arg0: i32) -> (i32, i32) {
    %c0_i32 = arith.constant 0 : i32
    %c0_i32_0 = arith.constant 0 : i32
    return %arg0, %c0_i32 : i32, i32
  }
}

</mosaic_0001>

<llo_original>
// kernel: tpu_custom_call.1
$region0: #{tpu_custom_call.1}
  #allocation0 [shape = 'u32[]', space=smem, size = 0x4, offset = 0x4, fixed_abs, tag = 'smem constant byte address 0x4 - core index']
  #allocation1 [shape = 'u32[144,128]{1,0:T(1,128)}', space=vmem, size = 0x12000, scoped, tag = 'internal scratch']
  %s0 = inlined_call_operand.hbm [shape: s32[1,512], index: 0, kind: input, shape index: {}]
  %s1 = inlined_call_operand.hbm [shape: f32[32,128], index: 1, kind: input, shape index: {}]
  %s2 = inlined_call_operand.hbm [shape: f32[256,128], index: 2, kind: input, shape index: {}]
  %s3 = inlined_call_operand.vmem [shape: f32[1,128], index: 3, kind: input, shape index: {}]
  %s4 = inlined_call_operand.vmem [shape: f32[1,128], index: 4, kind: input, shape index: {}]
  %s5 = inlined_call_operand.hbm [shape: f32[512,128], index: 5, kind: output, shape index: {}]
  %s6 = sld [smem:[#allocation0]]
  $region65: #{tpu_custom_call.1} parent=0
    _
  %s8 = ssub.s32 1, %s6
  %s9 = scalar_select 0, %s8, %s6
  $region1: #{tpu_custom_call.1} parent=0
    #allocation2 [shape = 'u8[2048]{0}', space=vmem, size = 0x800, scoped, tag = 'input window, operand 0']
    #allocation3 [shape = 's32[2]{0}', space=sflag, size = 0x8, scoped, tag = 'scoped memory for tpu_custom_call.1']
    #allocation4 [shape = 's32[2]{0}', space=sflag, size = 0x8, scoped, tag = 'scoped memory for tpu_custom_call.1']
    #allocation5 [shape = 'u8[16384]{0}', space=vmem, size = 0x4000, scoped, tag = 'input window, operand 1, single buffered']
    #allocation6 [shape = 's32[1]{0}', space=sflag, size = 0x4, scoped, tag = 'scoped memory for tpu_custom_call.1']
    #allocation7 [shape = 'u8[131072]{0}', space=vmem, size = 0x20000, scoped, tag = 'input window, operand 2, single buffered']
    #allocation8 [shape = 'u8[262144]{0}', space=vmem, size = 0x40000, scoped, tag = 'output window, operand 0']
    %10 = vsyncpa [#allocation3], 0
    %s11 = scalar_lea.sflag [#allocation3], 1
    %12 = vsyncpa %s11, 0
    %13 = vsyncpa [#allocation6], 0
    %14 = vsyncpa [#allocation4], 0
    %s15 = scalar_lea.sflag [#allocation4], 1
    %16 = vsyncpa %s15, 0
    loop: start=0, step=1, limit=4
    $region2: #{tpu_custom_call.1} parent=1 // loop_pre_header
      _
    $region3: #{tpu_custom_call.1} parent=1 // loop_header
      %s18 = sphi 0, %s22
      %p19 = scmp.ge.s32.totalorder %s18, 4
      %s28 = sphi 0, %s30
      %s31 = sphi 0, %s28
      %s32 = sphi 0, %s31
      %s48 = sphi 0, %s32
      %s52 = sphi 0, %s52
      %s54 = sphi 0, %s52
      %s55 = sphi 0, %s54
      %s69 = sphi 0, %s55
      %s73 = sphi 0, %s73
      %s75 = sphi 0, %s73
      %s76 = sphi 0, %s75
      %s90 = sphi 0, %s76
      %s94 = sphi 0, %s94
      %s96 = sphi 0, %s94
      %s97 = sphi 0, %s96
      %s111 = sphi 0, %s97
      %s115 = sphi 0, %s115
      %s117 = sphi 0, %s115
      %s118 = sphi 0, %s117
      %s132 = sphi 0, %s118
      %s138 = sphi 0, %s140
      %s141 = sphi 0, %s138
      %s142 = sphi 0, %s141
      %s158 = sphi 0, %s142
    $region4: #{tpu_custom_call.1} parent=1 // loop_header_branch
      %21 = sbr.rel (%p19) target = $region8
    $region5: #{tpu_custom_call.1} parent=1 // loop_body
      %s23 = ssub.s32 %s18, 1
      %s24 = ssub.s32 %s18, 2
      %s25 = sadd.s32 %s18, 1
      %s26 = ssub.s32 %s18, %s25
      %p27 = scmp.eq.s32.totalorder %s26, 0
      %s29 = sadd.s32 %s28, 1
      %s30 = scalar_select %p27, %s28, %s29
      %p33 = pneg %p27
      %p34 = scmp.eq.s32.totalorder %s18, 1
      %p35 = por %p33, %p34
      %p36 = scmp.ne.s32.totalorder %s28, %s31
      %p37 = scmp.eq.s32.totalorder %s18, 0
      %p38 = por %p36, %p37
      %p39 = scmp.ne.s32.totalorder %s28, %s31
      %p40 = scmp.eq.s32.totalorder %s23, 1
      %p41 = por %p39, %p40
      %p42 = scmp.ne.s32.totalorder %s31, %s32
      %p43 = scmp.eq.s32.totalorder %s23, 0
      %p44 = por %p42, %p43
      %p45 = scmp.ne.s32.totalorder %s31, %s32
      %p46 = scmp.eq.s32.totalorder %s24, 1
      %p47 = por %p45, %p46
      %p49 = scmp.ne.s32.totalorder %s32, %s48
      %p50 = scmp.eq.s32.totalorder %s24, 0
      %p51 = por %p49, %p50
      %s53 = sadd.s32 %s52, 1
      %p56 = scmp.eq.s32.totalorder %s18, 1
      %p57 = scmp.ne.s32.totalorder %s52, %s54
      %p58 = scmp.eq.s32.totalorder %s18, 0
      %p59 = por %p57, %p58
      %p60 = scmp.ne.s32.totalorder %s52, %s54
      %p61 = scmp.eq.s32.totalorder %s23, 1
      %p62 = por %p60, %p61
      %p63 = scmp.ne.s32.totalorder %s54, %s55
      %p64 = scmp.eq.s32.totalorder %s23, 0
      %p65 = por %p63, %p64
      %p66 = scmp.ne.s32.totalorder %s54, %s55
      %p67 = scmp.eq.s32.totalorder %s24, 1
      %p68 = por %p66, %p67
      %p70 = scmp.ne.s32.totalorder %s55, %s69
      %p71 = scmp.eq.s32.totalorder %s24, 0
      %p72 = por %p70, %p71
      %s74 = sadd.s32 %s73, 1
      %p77 = scmp.eq.s32.totalorder %s18, 1
      %p78 = scmp.ne.s32.totalorder %s73, %s75
      %p79 = scmp.eq.s32.totalorder %s18, 0
      %p80 = por %p78, %p79
      %p81 = scmp.ne.s32.totalorder %s73, %s75
      %p82 = scmp.eq.s32.totalorder %s23, 1
      %p83 = por %p81, %p82
      %p84 = scmp.ne.s32.totalorder %s75, %s76
      %p85 = scmp.eq.s32.totalorder %s23, 0
      %p86 = por %p84, %p85
      %p87 = scmp.ne.s32.totalorder %s75, %s76
      %p88 = scmp.eq.s32.totalorder %s24, 1
      %p89 = por %p87, %p88
      %p91 = scmp.ne.s32.totalorder %s76, %s90
      %p92 = scmp.eq.s32.totalorder %s24, 0
      %p93 = por %p91, %p92
      %s95 = sadd.s32 %s94, 1
      %p98 = scmp.eq.s32.totalorder %s18, 1
      %p99 = scmp.ne.s32.totalorder %s94, %s96
      %p100 = scmp.eq.s32.totalorder %s18, 0
      %p101 = por %p99, %p100
      %p102 = scmp.ne.s32.totalorder %s94, %s96
      %p103 = scmp.eq.s32.totalorder %s23, 1
      %p104 = por %p102, %p103
      %p105 = scmp.ne.s32.totalorder %s96, %s97
      %p106 = scmp.eq.s32.totalorder %s23, 0
      %p107 = por %p105, %p106
      %p108 = scmp.ne.s32.totalorder %s96, %s97
      %p109 = scmp.eq.s32.totalorder %s24, 1
      %p110 = por %p108, %p109
      %p112 = scmp.ne.s32.totalorder %s97, %s111
      %p113 = scmp.eq.s32.totalorder %s24, 0
      %p114 = por %p112, %p113
      %s116 = sadd.s32 %s115, 1
      %p119 = scmp.eq.s32.totalorder %s18, 1
      %p120 = scmp.ne.s32.totalorder %s115, %s117
      %p121 = scmp.eq.s32.totalorder %s18, 0
      %p122 = por %p120, %p121
      %p123 = scmp.ne.s32.totalorder %s115, %s117
      %p124 = scmp.eq.s32.totalorder %s23, 1
      %p125 = por %p123, %p124
      %p126 = scmp.ne.s32.totalorder %s117, %s118
      %p127 = scmp.eq.s32.totalorder %s23, 0
      %p128 = por %p126, %p127
      %p129 = scmp.ne.s32.totalorder %s117, %s118
      %p130 = scmp.eq.s32.totalorder %s24, 1
      %p131 = por %p129, %p130
      %p133 = scmp.ne.s32.totalorder %s118, %s132
      %p134 = scmp.eq.s32.totalorder %s24, 0
      %p135 = por %p133, %p134
      %s136 = ssub.s32 %s18, %s25
      %p137 = scmp.eq.s32.totalorder %s136, 0
      %s139 = sadd.s32 %s138, 1
      %s140 = scalar_select %p137, %s138, %s139
      %p143 = pneg %p137
      %p144 = scmp.eq.s32.totalorder %s18, 1
      %p145 = por %p143, %p144
      %p146 = scmp.ne.s32.totalorder %s138, %s141
      %p147 = scmp.eq.s32.totalorder %s18, 0
      %p148 = por %p146, %p147
      %p149 = scmp.ne.s32.totalorder %s138, %s141
      %p150 = scmp.eq.s32.totalorder %s23, 1
      %p151 = por %p149, %p150
      %p152 = scmp.ne.s32.totalorder %s141, %s142
      %p153 = scmp.eq.s32.totalorder %s23, 0
      %p154 = por %p152, %p153
      %p155 = scmp.ne.s32.totalorder %s141, %s142
      %p156 = scmp.eq.s32.totalorder %s24, 1
      %p157 = por %p155, %p156
      %p159 = scmp.ne.s32.totalorder %s142, %s158
      %p160 = scmp.eq.s32.totalorder %s24, 0
      %p161 = por %p159, %p160
      %p162 = scmp.le.s32.totalorder 1, %s18
      %p163 = scmp.lt.s32.totalorder %s18, 3
      %p164 = pnand %p162, %p163
      %p165 = pneg %p164
      // Predicated region
      $region9: #{tpu_custom_call.1} parent=5 // pred_check
        _
      $region10: #{tpu_custom_call.1} parent=5 // pred_check_branch
        %167 = sbr.rel (%p164) target = $region12
      $region11: #{tpu_custom_call.1} parent=5 // pred_region
        %s168 = ssub.s32 %s18, 1
        // Predicated region
        $region13: #{tpu_custom_call.1} parent=11 // pred_check
          %p169 = pneg %p65
        $region14: #{tpu_custom_call.1} parent=11 // pred_check_branch
          %171 = sbr.rel (%p169) target = $region16
        $region15: #{tpu_custom_call.1} parent=11 // pred_region
          %s173 = ssub.s32 512, 512
          %174 = vsyncadd [#allocation6], %s173
          %s175 = sshll.u32 [#allocation5], 4
          %s176 = int_to_ptr.vmem [resolvable:$true] %s175
          %181 = dma.hbm_to_vmem [thread:$0]  %s1, 512, %s176, [#allocation6], 128, 128, 8
        $region16: #{tpu_custom_call.1} parent=11 // pred_fallthru
          _
        // Predicated region
        $region17: #{tpu_custom_call.1} parent=11 // pred_check
          %p182 = pneg %p86
        $region18: #{tpu_custom_call.1} parent=11 // pred_check_branch
          %184 = sbr.rel (%p182) target = $region20
        $region19: #{tpu_custom_call.1} parent=11 // pred_region
          %s186 = ssub.s32 4096, 4096
          %187 = vsyncadd [#allocation6], %s186
          %s188 = sshll.u32 [#allocation7], 4
          %s189 = int_to_ptr.vmem [resolvable:$true] %s188
          %194 = dma.hbm_to_vmem [thread:$0]  %s2, 4096, %s189, [#allocation6], 128, 128, 8
        $region20: #{tpu_custom_call.1} parent=11 // pred_fallthru
          _
        // Predicated region
        $region21: #{tpu_custom_call.1} parent=11 // pred_check
          %p195 = pneg %p107
        $region22: #{tpu_custom_call.1} parent=11 // pred_check_branch
          %197 = sbr.rel (%p195) target = $region24
        $region23: #{tpu_custom_call.1} parent=11 // pred_region
          _
        $region24: #{tpu_custom_call.1} parent=11 // pred_fallthru
          _
        // Predicated region
        $region25: #{tpu_custom_call.1} parent=11 // pred_check
          %p198 = pneg %p128
        $region26: #{tpu_custom_call.1} parent=11 // pred_check_branch
          %200 = sbr.rel (%p198) target = $region28
        $region27: #{tpu_custom_call.1} parent=11 // pred_region
          _
        $region28: #{tpu_custom_call.1} parent=11 // pred_fallthru
          _
      $region12: #{tpu_custom_call.1} parent=5 // pred_fallthru
        _
      %p201 = scmp.lt.s32.totalorder %s18, 2
      // Predicated region
      $region29: #{tpu_custom_call.1} parent=5 // pred_check
        %p202 = pneg %p201
      $region30: #{tpu_custom_call.1} parent=5 // pred_check_branch
        %204 = sbr.rel (%p202) target = $region32
      $region31: #{tpu_custom_call.1} parent=5 // pred_region
        // Predicated region
        $region33: #{tpu_custom_call.1} parent=31 // pred_check
          %p205 = pneg %p38
        $region34: #{tpu_custom_call.1} parent=31 // pred_check_branch
          %207 = sbr.rel (%p205) target = $region36
        $region35: #{tpu_custom_call.1} parent=31 // pred_region
          %s208 = sand.u32 %s28, 1
          %s209 = scalar_lea.sflag [#allocation3], %s208
          %s210 = sand.u32 %s28, 1
          %s211 = smul.addr %s210, 2
          %s212 = scalar_lea.vmem [#allocation2], %s211
          %s213 = smul.u32 2, %s18
          %s215 = ssub.s32 32, 32
          %216 = vsyncadd %s209, %s215
          %s217 = smul.addr %s213, 16
          %s218 = scalar_lea.hbm %s0, %s217
          %s220 = sshll.u32 %s212, 4
          %s221 = int_to_ptr.vmem [resolvable:$true] %s220
          %223 = dma.hbm_to_vmem [thread:$0]  %s218, 32, %s221, %s209
        $region36: #{tpu_custom_call.1} parent=31 // pred_fallthru
          _
      $region32: #{tpu_custom_call.1} parent=5 // pred_fallthru
        _
      %p224 = scmp.le.s32.totalorder 1, %s18
      %p225 = scmp.lt.s32.totalorder %s18, 3
      %p226 = pnand %p224, %p225
      %p227 = pneg %p226
      // Predicated region
      $region37: #{tpu_custom_call.1} parent=5 // pred_check
        _
      $region38: #{tpu_custom_call.1} parent=5 // pred_check_branch
        %229 = sbr.rel (%p226) target = $region40
      $region39: #{tpu_custom_call.1} parent=5 // pred_region
        %s230 = ssub.s32 %s18, 1
        %s231 = sand.u32 %s31, 1
        %s232 = scalar_lea.sflag [#allocation3], %s231
        %s233 = sand.u32 %s31, 1
        %s234 = smul.addr %s233, 2
        %s235 = scalar_lea.vmem [#allocation2], %s234
        // Predicated region
        $region41: #{tpu_custom_call.1} parent=39 // pred_check
          %p236 = pneg %p44
        $region42: #{tpu_custom_call.1} parent=39 // pred_check_branch
          %238 = sbr.rel (%p236) target = $region44
        $region43: #{tpu_custom_call.1} parent=39 // pred_region
          %239 = dma.done %s232, 32
        $region44: #{tpu_custom_call.1} parent=39 // pred_fallthru
          _
        // Predicated region
        $region45: #{tpu_custom_call.1} parent=39 // pred_check
          %p240 = pneg %p65
        $region46: #{tpu_custom_call.1} parent=39 // pred_check_branch
          %242 = sbr.rel (%p240) target = $region48
        $region47: #{tpu_custom_call.1} parent=39 // pred_region
          %243 = dma.done [#allocation6], 512
        $region48: #{tpu_custom_call.1} parent=39 // pred_fallthru
          _
        // Predicated region
        $region49: #{tpu_custom_call.1} parent=39 // pred_check
          %p244 = pneg %p86
        $region50: #{tpu_custom_call.1} parent=39 // pred_check_branch
          %246 = sbr.rel (%p244) target = $region52
        $region51: #{tpu_custom_call.1} parent=39 // pred_region
          %247 = dma.done [#allocation6], 4096
        $region52: #{tpu_custom_call.1} parent=39 // pred_fallthru
          _
        %s248 = sand.u32 %s31, 1
        %s249 = scalar_lea.sflag [#allocation3], %s248
        %s250 = sand.u32 %s31, 1
        %s251 = smul.addr %s250, 2
        %s252 = scalar_lea.vmem [#allocation2], %s251
        %p253 = pneg %p44
        %p254 = pneg %p41
        %p255 = pneg %p65
        %p256 = pneg %p62
        %p257 = pneg %p86
        %p258 = pneg %p83
        %p259 = pneg %p107
        %p260 = pneg %p104
        %p261 = pneg %p128
        %p262 = pneg %p125
        %p263 = pneg %p154
        %p264 = pneg %p151
        %s265 = sand.u32 %s141, 1
        %s266 = scalar_lea.sflag [#allocation4], %s265
        %s267 = sand.u32 %s141, 1
        %s268 = smul.addr %s267, 256
        %s269 = scalar_lea.vmem [#allocation8], %s268
        %s270 = smul.u32 2, %s23
        %s271 = smul.u32 32, %s23
        %v272 = vld [vmem:[%s235] sm:$0x3]
        %v273 = vlaneseq
        %v274 = vshrl.u32 %v273, 7
        %v275 = vadd.s32 %v274, 8
        %v276 = vadd.s32 %v274, 16
        %v277 = vadd.s32 %v274, 24
        %v278 = vlaneseq
        %v279 = vshrl.u32 %v278, 7
        %v280 = vsub.s32 0, %v279
        %v281 = vrot.slane %v272, %v280
        %v282 = vlaneseq
        %v283 = vshrl.u32 %v282, 7
        %v284 = vsub.s32 1, %v283
        %v285 = vrot.slane %v272, %v284
        %vm286 = vcmp.eq.s32.totalorder %v281, %v274
        %vm287 = vcmp.eq.s32.totalorder %v285, %v274
        %vm288 = vcmp.eq.s32.totalorder %v281, %v275
        %vm289 = vcmp.eq.s32.totalorder %v285, %v275
        %vm290 = vcmp.eq.s32.totalorder %v281, %v276
        %vm291 = vcmp.eq.s32.totalorder %v285, %v276
        %vm292 = vcmp.eq.s32.totalorder %v281, %v277
        %vm293 = vcmp.eq.s32.totalorder %v285, %v277
        %v294 = vsel %vm286, 1, 0
        %v295 = vsel %vm287, 1, 0
        %v296 = vsel %vm288, 1, 0
        %v297 = vsel %vm289, 1, 0
        %v298 = vsel %vm290, 1, 0
        %v299 = vsel %vm291, 1, 0
        %v300 = vsel %vm292, 1, 0
        %v301 = vsel %vm293, 1, 0
        %v302 = vcvt.s32.f32 %v294
        %v303 = vcvt.s32.f32 %v295
        %v304 = vcvt.s32.f32 %v296
        %v305 = vcvt.s32.f32 %v297
        %v306 = vcvt.s32.f32 %v298
        %v307 = vcvt.s32.f32 %v299
        %v308 = vcvt.s32.f32 %v300
        %v309 = vcvt.s32.f32 %v301
        %v310 = vld [vmem:[#allocation5] sm:$0xff]
        %v311 = vld [vmem:[#allocation5 + $0x8] sm:$0xff]
        %v312 = vld [vmem:[#allocation5 + $0x10] sm:$0xff]
        %v313 = vld [vmem:[#allocation5 + $0x18] sm:$0xff]
        %v314 = vld [vmem:[#allocation7] sm:$0xff]
        %v315 = vld [vmem:[#allocation7 + $0x8] sm:$0xff]
        %v316 = vld [vmem:[#allocation7 + $0x10] sm:$0xff]
        %v317 = vld [vmem:[#allocation7 + $0x18] sm:$0xff]
        %v318 = vld [vmem:[#allocation7 + $0x20] sm:$0xff]
        %v319 = vld [vmem:[#allocation7 + $0x28] sm:$0xff]
        %v320 = vld [vmem:[#allocation7 + $0x30] sm:$0xff]
        %v321 = vld [vmem:[#allocation7 + $0x38] sm:$0xff]
        %v322 = vld [vmem:[#allocation7 + $0x40] sm:$0xff]
        %v323 = vld [vmem:[#allocation7 + $0x48] sm:$0xff]
        %v324 = vld [vmem:[#allocation7 + $0x50] sm:$0xff]
        %v325 = vld [vmem:[#allocation7 + $0x58] sm:$0xff]
        %v326 = vld [vmem:[#allocation7 + $0x60] sm:$0xff]
        %v327 = vld [vmem:[#allocation7 + $0x68] sm:$0xff]
        %v328 = vld [vmem:[#allocation7 + $0x70] sm:$0xff]
        %v329 = vld [vmem:[#allocation7 + $0x78] sm:$0xff]
        %v330 = vld [vmem:[#allocation7 + $0x80] sm:$0xff]
        %v331 = vld [vmem:[#allocation7 + $0x88] sm:$0xff]
        %v332 = vld [vmem:[#allocation7 + $0x90] sm:$0xff]
        %v333 = vld [vmem:[#allocation7 + $0x98] sm:$0xff]
        %v334 = vld [vmem:[#allocation7 + $0xa0] sm:$0xff]
        %v335 = vld [vmem:[#allocation7 + $0xa8] sm:$0xff]
        %v336 = vld [vmem:[#allocation7 + $0xb0] sm:$0xff]
        %v337 = vld [vmem:[#allocation7 + $0xb8] sm:$0xff]
        %v338 = vld [vmem:[#allocation7 + $0xc0] sm:$0xff]
        %v339 = vld [vmem:[#allocation7 + $0xc8] sm:$0xff]
        %v340 = vld [vmem:[#allocation7 + $0xd0] sm:$0xff]
        %v341 = vld [vmem:[#allocation7 + $0xd8] sm:$0xff]
        %v342 = vld [vmem:[#allocation7 + $0xe0] sm:$0xff]
        %v343 = vld [vmem:[#allocation7 + $0xe8] sm:$0xff]
        %v344 = vld [vmem:[#allocation7 + $0xf0] sm:$0xff]
        %v345 = vld [vmem:[#allocation7 + $0xf8] sm:$0xff]
        %346 = vxpose.xlu0.b32.start [1/16] %v302, 128
        %347 = vxpose.xlu0.b32.cont [2/16] %v304, 128
        %348 = vxpose.xlu0.b32.cont [3/16] %v306, 128
        %349 = vxpose.xlu0.b32.cont [4/16] %v308, 128
        %350 = vxpose.xlu0.b32.cont [5/16] 0.0, 128
        %351 = vxpose.xlu0.b32.cont [6/16] 0.0, 128
        %352 = vxpose.xlu0.b32.cont [7/16] 0.0, 128
        %353 = vxpose.xlu0.b32.cont [8/16] 0.0, 128
        %354 = vxpose.xlu0.b32.cont [9/16] 0.0, 128
        %355 = vxpose.xlu0.b32.cont [10/16] 0.0, 128
        %356 = vxpose.xlu0.b32.cont [11/16] 0.0, 128
        %357 = vxpose.xlu0.b32.cont [12/16] 0.0, 128
        %358 = vxpose.xlu0.b32.cont [13/16] 0.0, 128
        %359 = vxpose.xlu0.b32.cont [14/16] 0.0, 128
        %360 = vxpose.xlu0.b32.cont [15/16] 0.0, 128
        %361 = vxpose.xlu0.b32.end [16/16] 0.0, 128
        %v362 = vpop.trf.xlu0
        %v363 = vpop.trf.xlu0
        %v364 = vpop.trf.xlu0
        %v365 = vpop.trf.xlu0
        %v366 = vpop.trf.xlu0
        %v367 = vpop.trf.xlu0
        %v368 = vpop.trf.xlu0
        %v369 = vpop.trf.xlu0
        %v370 = vpop.trf.xlu0
        %v371 = vpop.trf.xlu0
        %v372 = vpop.trf.xlu0
        %v373 = vpop.trf.xlu0
        %v374 = vpop.trf.xlu0
        %v375 = vpop.trf.xlu0
        %v376 = vpop.trf.xlu0
        %v377 = vpop.trf.xlu0
        %378 = vxpose.xlu0.b32.start [1/16] %v303, 128
        %379 = vxpose.xlu0.b32.cont [2/16] %v305, 128
        %380 = vxpose.xlu0.b32.cont [3/16] %v307, 128
        %381 = vxpose.xlu0.b32.cont [4/16] %v309, 128
        %382 = vxpose.xlu0.b32.cont [5/16] 0.0, 128
        %383 = vxpose.xlu0.b32.cont [6/16] 0.0, 128
        %384 = vxpose.xlu0.b32.cont [7/16] 0.0, 128
        %385 = vxpose.xlu0.b32.cont [8/16] 0.0, 128
        %386 = vxpose.xlu0.b32.cont [9/16] 0.0, 128
        %387 = vxpose.xlu0.b32.cont [10/16] 0.0, 128
        %388 = vxpose.xlu0.b32.cont [11/16] 0.0, 128
        %389 = vxpose.xlu0.b32.cont [12/16] 0.0, 128
        %390 = vxpose.xlu0.b32.cont [13/16] 0.0, 128
        %391 = vxpose.xlu0.b32.cont [14/16] 0.0, 128
        %392 = vxpose.xlu0.b32.cont [15/16] 0.0, 128
        %393 = vxpose.xlu0.b32.end [16/16] 0.0, 128
        %v394 = vpop.trf.xlu0
        %v395 = vpop.trf.xlu0
        %v396 = vpop.trf.xlu0
        %v397 = vpop.trf.xlu0
        %v398 = vpop.trf.xlu0
        %v399 = vpop.trf.xlu0
        %v400 = vpop.trf.xlu0
        %v401 = vpop.trf.xlu0
        %v402 = vpop.trf.xlu0
        %v403 = vpop.trf.xlu0
        %v404 = vpop.trf.xlu0
        %v405 = vpop.trf.xlu0
        %v406 = vpop.trf.xlu0
        %v407 = vpop.trf.xlu0
        %v408 = vpop.trf.xlu0
        %v409 = vpop.trf.xlu0
        %vm410 = vcmask 261120
        %v412 = vsel %vm410, %v362, 0
        %v415 = vsel %vm410, %v363, 0
        %v418 = vsel %vm410, %v364, 0
        %v421 = vsel %vm410, %v365, 0
        %v424 = vsel %vm410, %v366, 0
        %v427 = vsel %vm410, %v367, 0
        %v430 = vsel %vm410, %v368, 0
        %v433 = vsel %vm410, %v369, 0
        %v436 = vsel %vm410, %v370, 0
        %v439 = vsel %vm410, %v371, 0
        %v442 = vsel %vm410, %v372, 0
        %v445 = vsel %vm410, %v373, 0
        %v448 = vsel %vm410, %v374, 0
        %v451 = vsel %vm410, %v375, 0
        %v454 = vsel %vm410, %v376, 0
        %v457 = vsel %vm410, %v377, 0
        %v460 = vsel %vm410, %v394, 0
        %v463 = vsel %vm410, %v395, 0
        %v466 = vsel %vm410, %v396, 0
        %v469 = vsel %vm410, %v397, 0
        %v472 = vsel %vm410, %v398, 0
        %v475 = vsel %vm410, %v399, 0
        %v478 = vsel %vm410, %v400, 0
        %v481 = vsel %vm410, %v401, 0
        %v484 = vsel %vm410, %v402, 0
        %v487 = vsel %vm410, %v403, 0
        %v490 = vsel %vm410, %v404, 0
        %v493 = vsel %vm410, %v405, 0
        %v496 = vsel %vm410, %v406, 0
        %v499 = vsel %vm410, %v407, 0
        %v502 = vsel %vm410, %v408, 0
        %v505 = vsel %vm410, %v409, 0
        %507 = vmatprep.subr.mxu0 0.0
        %508 = vmatpush1.msra.mxu0 %v310
        %509 = vmatprep.subr.mxu0 0.0
        %510 = vmatpush1.msra.mxu0 %v311
        %511 = vmatprep.subr.mxu0 0.0
        %512 = vmatpush1.msra.mxu0 %v312
        %513 = vmatprep.subr.mxu0 0.0
        %514 = vmatpush1.msra.mxu0 %v313
        %515 = vmatprep.subr.mxu0 0.0
        %516 = vmatpush1.msra.mxu0 0.0
        %517 = vmatprep.subr.mxu0 0.0
        %518 = vmatpush1.msra.mxu0 0.0
        %519 = vmatprep.subr.mxu0 0.0
        %520 = vmatpush1.msra.mxu0 0.0
        %521 = vmatprep.subr.mxu0 0.0
        %522 = vmatpush1.msra.mxu0 0.0
        %523 = vmatprep.subr.mxu0 0.0
        %524 = vmatpush1.msra.mxu0 0.0
        %525 = vmatprep.subr.mxu0 0.0
        %526 = vmatpush1.msra.mxu0 0.0
        %527 = vmatprep.subr.mxu0 0.0
        %528 = vmatpush1.msra.mxu0 0.0
        %529 = vmatprep.subr.mxu0 0.0
        %530 = vmatpush1.msra.mxu0 0.0
        %531 = vmatprep.subr.mxu0 0.0
        %532 = vmatpush1.msra.mxu0 0.0
        %533 = vmatprep.subr.mxu0 0.0
        %534 = vmatpush1.msra.mxu0 0.0
        %535 = vmatprep.subr.mxu0 0.0
        %536 = vmatpush1.msra.mxu0 0.0
        %537 = vmatprep.subr.mxu0 0.0
        %538 = vmatpush1.msra.mxu0 0.0
        %539 = vmatprep.subr.mxu0 0.0
        %540 = vmatpush1.msra.mxu0 0.0
        %541 = vmatprep.subr.mxu0 0.0
        %542 = vmatpush1.msra.mxu0 0.0
        %543 = vmatprep.subr.mxu0 0.0
        %544 = vmatpush1.msra.mxu0 0.0
        %545 = vmatprep.subr.mxu0 0.0
        %546 = vmatpush1.msra.mxu0 0.0
        %547 = vmatprep.subr.mxu0 0.0
        %548 = vmatpush1.msra.mxu0 0.0
        %549 = vmatprep.subr.mxu0 0.0
        %550 = vmatpush1.msra.mxu0 0.0
        %551 = vmatprep.subr.mxu0 0.0
        %552 = vmatpush1.msra.mxu0 0.0
        %553 = vmatprep.subr.mxu0 0.0
        %554 = vmatpush1.msra.mxu0 0.0
        %555 = vmatprep.subr.mxu0 0.0
        %556 = vmatpush1.msra.mxu0 0.0
        %557 = vmatprep.subr.mxu0 0.0
        %558 = vmatpush1.msra.mxu0 0.0
        %559 = vmatprep.subr.mxu0 0.0
        %560 = vmatpush1.msra.mxu0 0.0
        %561 = vmatprep.subr.mxu0 0.0
        %562 = vmatpush1.msra.mxu0 0.0
        %563 = vmatprep.subr.mxu0 0.0
        %564 = vmatpush1.msra.mxu0 0.0
        %565 = vmatprep.subr.mxu0 0.0
        %566 = vmatpush1.msra.mxu0 0.0
        %567 = vmatprep.subr.mxu0 0.0
        %568 = vmatpush1.msra.mxu0 0.0
        %569 = vmatprep.subr.mxu0 0.0
        %570 = vmatpush1.msra.mxu0 0.0
        %571 = vmatprep.mubr.f32.mxu0 0.0
        %572 = vmatmul.mubr.f32.gmra.mrb[0].mxu0 %v412
        %v573 = vpop.f32.mrb[0].mxu0
        %v574 = vadd.f32 %v314, %v573
        %v575 = vpop.f32.mrb[0].mxu0
        %576 = vmatprep.mubr.f32.mxu0 0.0
        %577 = vmatmul.mubr.f32.gmra.mrb[0].mxu0 %v415
        %v578 = vpop.f32.mrb[0].mxu0
        %v579 = vadd.f32 %v315, %v578
        %v580 = vpop.f32.mrb[0].mxu0
        %581 = vmatprep.mubr.f32.mxu0 0.0
        %582 = vmatmul.mubr.f32.gmra.mrb[0].mxu0 %v418
        %v583 = vpop.f32.mrb[0].mxu0
        %v584 = vadd.f32 %v316, %v583
        %v585 = vpop.f32.mrb[0].mxu0
        %586 = vmatprep.mubr.f32.mxu0 0.0
        %587 = vmatmul.mubr.f32.gmra.mrb[0].mxu0 %v421
        %v588 = vpop.f32.mrb[0].mxu0
        %v589 = vadd.f32 %v317, %v588
        %v590 = vpop.f32.mrb[0].mxu0
        %591 = vmatprep.mubr.f32.mxu0 0.0
        %592 = vmatmul.mubr.f32.gmra.mrb[0].mxu0 %v424
        %v593 = vpop.f32.mrb[0].mxu0
        %v594 = vadd.f32 %v318, %v593
        %v595 = vpop.f32.mrb[0].mxu0
        %596 = vmatprep.mubr.f32.mxu0 0.0
        %597 = vmatmul.mubr.f32.gmra.mrb[0].mxu0 %v427
        %v598 = vpop.f32.mrb[0].mxu0
        %v599 = vadd.f32 %v319, %v598
        %v600 = vpop.f32.mrb[0].mxu0
        %601 = vmatprep.mubr.f32.mxu0 0.0
        %602 = vmatmul.mubr.f32.gmra.mrb[0].mxu0 %v430
        %v603 = vpop.f32.mrb[0].mxu0
        %v604 = vadd.f32 %v320, %v603
        %v605 = vpop.f32.mrb[0].mxu0
        %606 = vmatprep.mubr.f32.mxu0 0.0
        %607 = vmatmul.mubr.f32.gmra.mrb[0].mxu0 %v433
        %v608 = vpop.f32.mrb[0].mxu0
        %v609 = vadd.f32 %v321, %v608
        %v610 = vpop.f32.mrb[0].mxu0
        %611 = vmatprep.mubr.f32.mxu0 0.0
        %612 = vmatmul.mubr.f32.gmra.mrb[0].mxu0 %v436
        %v613 = vpop.f32.mrb[0].mxu0
        %v614 = vadd.f32 %v322, %v613
        %v615 = vpop.f32.mrb[0].mxu0
        %616 = vmatprep.mubr.f32.mxu0 0.0
        %617 = vmatmul.mubr.f32.gmra.mrb[0].mxu0 %v439
        %v618 = vpop.f32.mrb[0].mxu0
        %v619 = vadd.f32 %v323, %v618
        %v620 = vpop.f32.mrb[0].mxu0
        %621 = vmatprep.mubr.f32.mxu0 0.0
        %622 = vmatmul.mubr.f32.gmra.mrb[0].mxu0 %v442
        %v623 = vpop.f32.mrb[0].mxu0
        %v624 = vadd.f32 %v324, %v623
        %v625 = vpop.f32.mrb[0].mxu0
        %626 = vmatprep.mubr.f32.mxu0 0.0
        %627 = vmatmul.mubr.f32.gmra.mrb[0].mxu0 %v445
        %v628 = vpop.f32.mrb[0].mxu0
        %v629 = vadd.f32 %v325, %v628
        %v630 = vpop.f32.mrb[0].mxu0
        %631 = vmatprep.mubr.f32.mxu0 0.0
        %632 = vmatmul.mubr.f32.gmra.mrb[0].mxu0 %v448
        %v633 = vpop.f32.mrb[0].mxu0
        %v634 = vadd.f32 %v326, %v633
        %v635 = vpop.f32.mrb[0].mxu0
        %636 = vmatprep.mubr.f32.mxu0 0.0
        %637 = vmatmul.mubr.f32.gmra.mrb[0].mxu0 %v451
        %v638 = vpop.f32.mrb[0].mxu0
        %v639 = vadd.f32 %v327, %v638
        %v640 = vpop.f32.mrb[0].mxu0
        %641 = vmatprep.mubr.f32.mxu0 0.0
        %642 = vmatmul.mubr.f32.gmra.mrb[0].mxu0 %v454
        %v643 = vpop.f32.mrb[0].mxu0
        %v644 = vadd.f32 %v328, %v643
        %v645 = vpop.f32.mrb[0].mxu0
        %646 = vmatprep.mubr.f32.mxu0 0.0
        %647 = vmatmul.mubr.f32.gmra.mrb[0].mxu0 %v457
        %v648 = vpop.f32.mrb[0].mxu0
        %v649 = vadd.f32 %v329, %v648
        %v650 = vpop.f32.mrb[0].mxu0
        %651 = vmatprep.mubr.f32.mxu0 0.0
        %652 = vmatmul.mubr.f32.gmra.mrb[0].mxu0 %v460
        %v653 = vpop.f32.mrb[0].mxu0
        %v654 = vadd.f32 %v330, %v653
        %v655 = vpop.f32.mrb[0].mxu0
        %656 = vmatprep.mubr.f32.mxu0 0.0
        %657 = vmatmul.mubr.f32.gmra.mrb[0].mxu0 %v463
        %v658 = vpop.f32.mrb[0].mxu0
        %v659 = vadd.f32 %v331, %v658
        %v660 = vpop.f32.mrb[0].mxu0
        %661 = vmatprep.mubr.f32.mxu0 0.0
        %662 = vmatmul.mubr.f32.gmra.mrb[0].mxu0 %v466
        %v663 = vpop.f32.mrb[0].mxu0
        %v664 = vadd.f32 %v332, %v663
        %v665 = vpop.f32.mrb[0].mxu0
        %666 = vmatprep.mubr.f32.mxu0 0.0
        %667 = vmatmul.mubr.f32.gmra.mrb[0].mxu0 %v469
        %v668 = vpop.f32.mrb[0].mxu0
        %v669 = vadd.f32 %v333, %v668
        %v670 = vpop.f32.mrb[0].mxu0
        %671 = vmatprep.mubr.f32.mxu0 0.0
        %672 = vmatmul.mubr.f32.gmra.mrb[0].mxu0 %v472
        %v673 = vpop.f32.mrb[0].mxu0
        %v674 = vadd.f32 %v334, %v673
        %v675 = vpop.f32.mrb[0].mxu0
        %676 = vmatprep.mubr.f32.mxu0 0.0
        %677 = vmatmul.mubr.f32.gmra.mrb[0].mxu0 %v475
        %v678 = vpop.f32.mrb[0].mxu0
        %v679 = vadd.f32 %v335, %v678
        %v680 = vpop.f32.mrb[0].mxu0
        %681 = vmatprep.mubr.f32.mxu0 0.0
        %682 = vmatmul.mubr.f32.gmra.mrb[0].mxu0 %v478
        %v683 = vpop.f32.mrb[0].mxu0
        %v684 = vadd.f32 %v336, %v683
        %v685 = vpop.f32.mrb[0].mxu0
        %686 = vmatprep.mubr.f32.mxu0 0.0
        %687 = vmatmul.mubr.f32.gmra.mrb[0].mxu0 %v481
        %v688 = vpop.f32.mrb[0].mxu0
        %v689 = vadd.f32 %v337, %v688
        %v690 = vpop.f32.mrb[0].mxu0
        %691 = vmatprep.mubr.f32.mxu0 0.0
        %692 = vmatmul.mubr.f32.gmra.mrb[0].mxu0 %v484
        %v693 = vpop.f32.mrb[0].mxu0
        %v694 = vadd.f32 %v338, %v693
        %v695 = vpop.f32.mrb[0].mxu0
        %696 = vmatprep.mubr.f32.mxu0 0.0
        %697 = vmatmul.mubr.f32.gmra.mrb[0].mxu0 %v487
        %v698 = vpop.f32.mrb[0].mxu0
        %v699 = vadd.f32 %v339, %v698
        %v700 = vpop.f32.mrb[0].mxu0
        %701 = vmatprep.mubr.f32.mxu0 0.0
        %702 = vmatmul.mubr.f32.gmra.mrb[0].mxu0 %v490
        %v703 = vpop.f32.mrb[0].mxu0
        %v704 = vadd.f32 %v340, %v703
        %v705 = vpop.f32.mrb[0].mxu0
        %706 = vmatprep.mubr.f32.mxu0 0.0
        %707 = vmatmul.mubr.f32.gmra.mrb[0].mxu0 %v493
        %v708 = vpop.f32.mrb[0].mxu0
        %v709 = vadd.f32 %v341, %v708
        %v710 = vpop.f32.mrb[0].mxu0
        %711 = vmatprep.mubr.f32.mxu0 0.0
        %712 = vmatmul.mubr.f32.gmra.mrb[0].mxu0 %v496
        %v713 = vpop.f32.mrb[0].mxu0
        %v714 = vadd.f32 %v342, %v713
        %v715 = vpop.f32.mrb[0].mxu0
        %716 = vmatprep.mubr.f32.mxu0 0.0
        %717 = vmatmul.mubr.f32.gmra.mrb[0].mxu0 %v499
        %v718 = vpop.f32.mrb[0].mxu0
        %v719 = vadd.f32 %v343, %v718
        %v720 = vpop.f32.mrb[0].mxu0
        %721 = vmatprep.mubr.f32.mxu0 0.0
        %722 = vmatmul.mubr.f32.gmra.mrb[0].mxu0 %v502
        %v723 = vpop.f32.mrb[0].mxu0
        %v724 = vadd.f32 %v344, %v723
        %v725 = vpop.f32.mrb[0].mxu0
        %726 = vmatprep.mubr.f32.mxu0 0.0
        %727 = vmatmul.mubr.f32.gmra.mrb[0].mxu0 %v505
        %v728 = vpop.f32.mrb[0].mxu0
        %v729 = vadd.f32 %v345, %v728
        %v730 = vpop.f32.mrb[0].mxu0
        %731 = vdwg.mxu0
        %732 = vadd.xlane.f32.xlu0 %v574
        %v733 = vpop.xlane.xlu0 %732
        %734 = vadd.xlane.f32.xlu0 %v579
        %v735 = vpop.xlane.xlu0 %734
        %736 = vadd.xlane.f32.xlu0 %v584
        %v737 = vpop.xlane.xlu0 %736
        %738 = vadd.xlane.f32.xlu0 %v589
        %v739 = vpop.xlane.xlu0 %738
        %740 = vadd.xlane.f32.xlu0 %v594
        %v741 = vpop.xlane.xlu0 %740
        %742 = vadd.xlane.f32.xlu0 %v599
        %v743 = vpop.xlane.xlu0 %742
        %744 = vadd.xlane.f32.xlu0 %v604
        %v745 = vpop.xlane.xlu0 %744
        %746 = vadd.xlane.f32.xlu0 %v609
        %v747 = vpop.xlane.xlu0 %746
        %748 = vadd.xlane.f32.xlu0 %v614
        %v749 = vpop.xlane.xlu0 %748
        %750 = vadd.xlane.f32.xlu0 %v619
        %v751 = vpop.xlane.xlu0 %750
        %752 = vadd.xlane.f32.xlu0 %v624
        %v753 = vpop.xlane.xlu0 %752
        %754 = vadd.xlane.f32.xlu0 %v629
        %v755 = vpop.xlane.xlu0 %754
        %756 = vadd.xlane.f32.xlu0 %v634
        %v757 = vpop.xlane.xlu0 %756
        %758 = vadd.xlane.f32.xlu0 %v639
        %v759 = vpop.xlane.xlu0 %758
        %760 = vadd.xlane.f32.xlu0 %v644
        %v761 = vpop.xlane.xlu0 %760
        %762 = vadd.xlane.f32.xlu0 %v649
        %v763 = vpop.xlane.xlu0 %762
        %764 = vadd.xlane.f32.xlu0 %v654
        %v765 = vpop.xlane.xlu0 %764
        %766 = vadd.xlane.f32.xlu0 %v659
        %v767 = vpop.xlane.xlu0 %766
        %768 = vadd.xlane.f32.xlu0 %v664
        %v769 = vpop.xlane.xlu0 %768
        %770 = vadd.xlane.f32.xlu0 %v669
        %v771 = vpop.xlane.xlu0 %770
        %772 = vadd.xlane.f32.xlu0 %v674
        %v773 = vpop.xlane.xlu0 %772
        %774 = vadd.xlane.f32.xlu0 %v679
        %v775 = vpop.xlane.xlu0 %774
        %776 = vadd.xlane.f32.xlu0 %v684
        %v777 = vpop.xlane.xlu0 %776
        %778 = vadd.xlane.f32.xlu0 %v689
        %v779 = vpop.xlane.xlu0 %778
        %780 = vadd.xlane.f32.xlu0 %v694
        %v781 = vpop.xlane.xlu0 %780
        %782 = vadd.xlane.f32.xlu0 %v699
        %v783 = vpop.xlane.xlu0 %782
        %784 = vadd.xlane.f32.xlu0 %v704
        %v785 = vpop.xlane.xlu0 %784
        %786 = vadd.xlane.f32.xlu0 %v709
        %v787 = vpop.xlane.xlu0 %786
        %788 = vadd.xlane.f32.xlu0 %v714
        %v789 = vpop.xlane.xlu0 %788
        %790 = vadd.xlane.f32.xlu0 %v719
        %v791 = vpop.xlane.xlu0 %790
        %792 = vadd.xlane.f32.xlu0 %v724
        %v793 = vpop.xlane.xlu0 %792
        %794 = vadd.xlane.f32.xlu0 %v729
        %v795 = vpop.xlane.xlu0 %794
        %v796 = vrcp.pop 128.0
        %v797 = vmul.f32 %v733, %v796
        %v798 = vmul.f32 %v735, %v796
        %v799 = vmul.f32 %v737, %v796
        %v800 = vmul.f32 %v739, %v796
        %v801 = vmul.f32 %v741, %v796
        %v802 = vmul.f32 %v743, %v796
        %v803 = vmul.f32 %v745, %v796
        %v804 = vmul.f32 %v747, %v796
        %v805 = vmul.f32 %v749, %v796
        %v806 = vmul.f32 %v751, %v796
        %v807 = vmul.f32 %v753, %v796
        %v808 = vmul.f32 %v755, %v796
        %v809 = vmul.f32 %v757, %v796
        %v810 = vmul.f32 %v759, %v796
        %v811 = vmul.f32 %v761, %v796
        %v812 = vmul.f32 %v763, %v796
        %v813 = vmul.f32 %v765, %v796
        %v814 = vmul.f32 %v767, %v796
        %v815 = vmul.f32 %v769, %v796
        %v816 = vmul.f32 %v771, %v796
        %v817 = vmul.f32 %v773, %v796
        %v818 = vmul.f32 %v775, %v796
        %v819 = vmul.f32 %v777, %v796
        %v820 = vmul.f32 %v779, %v796
        %v821 = vmul.f32 %v781, %v796
        %v822 = vmul.f32 %v783, %v796
        %v823 = vmul.f32 %v785, %v796
        %v824 = vmul.f32 %v787, %v796
        %v825 = vmul.f32 %v789, %v796
        %v826 = vmul.f32 %v791, %v796
        %v827 = vmul.f32 %v793, %v796
        %v828 = vmul.f32 %v795, %v796
        %v829 = vmul.f32 %v574, %v574
        %v830 = vmul.f32 %v579, %v579
        %v831 = vmul.f32 %v584, %v584
        %v832 = vmul.f32 %v589, %v589
        %v833 = vmul.f32 %v594, %v594
        %v834 = vmul.f32 %v599, %v599
        %v835 = vmul.f32 %v604, %v604
        %v836 = vmul.f32 %v609, %v609
        %v837 = vmul.f32 %v614, %v614
        %v838 = vmul.f32 %v619, %v619
        %v839 = vmul.f32 %v624, %v624
        %v840 = vmul.f32 %v629, %v629
        %v841 = vmul.f32 %v634, %v634
        %v842 = vmul.f32 %v639, %v639
        %v843 = vmul.f32 %v644, %v644
        %v844 = vmul.f32 %v649, %v649
        %v845 = vmul.f32 %v654, %v654
        %v846 = vmul.f32 %v659, %v659
        %v847 = vmul.f32 %v664, %v664
        %v848 = vmul.f32 %v669, %v669
        %v849 = vmul.f32 %v674, %v674
        %v850 = vmul.f32 %v679, %v679
        %v851 = vmul.f32 %v684, %v684
        %v852 = vmul.f32 %v689, %v689
        %v853 = vmul.f32 %v694, %v694
        %v854 = vmul.f32 %v699, %v699
        %v855 = vmul.f32 %v704, %v704
        %v856 = vmul.f32 %v709, %v709
        %v857 = vmul.f32 %v714, %v714
        %v858 = vmul.f32 %v719, %v719
        %v859 = vmul.f32 %v724, %v724
        %v860 = vmul.f32 %v729, %v729
        %861 = vadd.xlane.f32.xlu0 %v829
        %v862 = vpop.xlane.xlu0 %861
        %863 = vadd.xlane.f32.xlu0 %v830
        %v864 = vpop.xlane.xlu0 %863
        %865 = vadd.xlane.f32.xlu0 %v831
        %v866 = vpop.xlane.xlu0 %865
        %867 = vadd.xlane.f32.xlu0 %v832
        %v868 = vpop.xlane.xlu0 %867
        %869 = vadd.xlane.f32.xlu0 %v833
        %v870 = vpop.xlane.xlu0 %869
        %871 = vadd.xlane.f32.xlu0 %v834
        %v872 = vpop.xlane.xlu0 %871
        %873 = vadd.xlane.f32.xlu0 %v835
        %v874 = vpop.xlane.xlu0 %873
        %875 = vadd.xlane.f32.xlu0 %v836
        %v876 = vpop.xlane.xlu0 %875
        %877 = vadd.xlane.f32.xlu0 %v837
        %v878 = vpop.xlane.xlu0 %877
        %879 = vadd.xlane.f32.xlu0 %v838
        %v880 = vpop.xlane.xlu0 %879
        %881 = vadd.xlane.f32.xlu0 %v839
        %v882 = vpop.xlane.xlu0 %881
        %883 = vadd.xlane.f32.xlu0 %v840
        %v884 = vpop.xlane.xlu0 %883
        %885 = vadd.xlane.f32.xlu0 %v841
        %v886 = vpop.xlane.xlu0 %885
        %887 = vadd.xlane.f32.xlu0 %v842
        %v888 = vpop.xlane.xlu0 %887
        %889 = vadd.xlane.f32.xlu0 %v843
        %v890 = vpop.xlane.xlu0 %889
        %891 = vadd.xlane.f32.xlu0 %v844
        %v892 = vpop.xlane.xlu0 %891
        %893 = vadd.xlane.f32.xlu0 %v845
        %v894 = vpop.xlane.xlu0 %893
        %895 = vadd.xlane.f32.xlu0 %v846
        %v896 = vpop.xlane.xlu0 %895
        %897 = vadd.xlane.f32.xlu0 %v847
        %v898 = vpop.xlane.xlu0 %897
        %899 = vadd.xlane.f32.xlu0 %v848
        %v900 = vpop.xlane.xlu0 %899
        %901 = vadd.xlane.f32.xlu0 %v849
        %v902 = vpop.xlane.xlu0 %901
        %903 = vadd.xlane.f32.xlu0 %v850
        %v904 = vpop.xlane.xlu0 %903
        %905 = vadd.xlane.f32.xlu0 %v851
        %v906 = vpop.xlane.xlu0 %905
        %907 = vadd.xlane.f32.xlu0 %v852
        %v908 = vpop.xlane.xlu0 %907
        %909 = vadd.xlane.f32.xlu0 %v853
        %v910 = vpop.xlane.xlu0 %909
        %911 = vadd.xlane.f32.xlu0 %v854
        %v912 = vpop.xlane.xlu0 %911
        %913 = vadd.xlane.f32.xlu0 %v855
        %v914 = vpop.xlane.xlu0 %913
        %915 = vadd.xlane.f32.xlu0 %v856
        %v916 = vpop.xlane.xlu0 %915
        %917 = vadd.xlane.f32.xlu0 %v857
        %v918 = vpop.xlane.xlu0 %917
        %919 = vadd.xlane.f32.xlu0 %v858
        %v920 = vpop.xlane.xlu0 %919
        %921 = vadd.xlane.f32.xlu0 %v859
        %v922 = vpop.xlane.xlu0 %921
        %923 = vadd.xlane.f32.xlu0 %v860
        %v924 = vpop.xlane.xlu0 %923
        %v925 = vmul.f32 %v862, %v796
        %v926 = vmul.f32 %v864, %v796
        %v927 = vmul.f32 %v866, %v796
        %v928 = vmul.f32 %v868, %v796
        %v929 = vmul.f32 %v870, %v796
        %v930 = vmul.f32 %v872, %v796
        %v931 = vmul.f32 %v874, %v796
        %v932 = vmul.f32 %v876, %v796
        %v933 = vmul.f32 %v878, %v796
        %v934 = vmul.f32 %v880, %v796
        %v935 = vmul.f32 %v882, %v796
        %v936 = vmul.f32 %v884, %v796
        %v937 = vmul.f32 %v886, %v796
        %v938 = vmul.f32 %v888, %v796
        %v939 = vmul.f32 %v890, %v796
        %v940 = vmul.f32 %v892, %v796
        %v941 = vmul.f32 %v894, %v796
        %v942 = vmul.f32 %v896, %v796
        %v943 = vmul.f32 %v898, %v796
        %v944 = vmul.f32 %v900, %v796
        %v945 = vmul.f32 %v902, %v796
        %v946 = vmul.f32 %v904, %v796
        %v947 = vmul.f32 %v906, %v796
        %v948 = vmul.f32 %v908, %v796
        %v949 = vmul.f32 %v910, %v796
        %v950 = vmul.f32 %v912, %v796
        %v951 = vmul.f32 %v914, %v796
        %v952 = vmul.f32 %v916, %v796
        %v953 = vmul.f32 %v918, %v796
        %v954 = vmul.f32 %v920, %v796
        %v955 = vmul.f32 %v922, %v796
        %v956 = vmul.f32 %v924, %v796
        %v957 = vmul.f32 %v797, %v797
        %v958 = vmul.f32 %v798, %v798
        %v959 = vmul.f32 %v799, %v799
        %v960 = vmul.f32 %v800, %v800
        %v961 = vmul.f32 %v801, %v801
        %v962 = vmul.f32 %v802, %v802
        %v963 = vmul.f32 %v803, %v803
        %v964 = vmul.f32 %v804, %v804
        %v965 = vmul.f32 %v805, %v805
        %v966 = vmul.f32 %v806, %v806
        %v967 = vmul.f32 %v807, %v807
        %v968 = vmul.f32 %v808, %v808
        %v969 = vmul.f32 %v809, %v809
        %v970 = vmul.f32 %v810, %v810
        %v971 = vmul.f32 %v811, %v811
        %v972 = vmul.f32 %v812, %v812
        %v973 = vmul.f32 %v813, %v813
        %v974 = vmul.f32 %v814, %v814
        %v975 = vmul.f32 %v815, %v815
        %v976 = vmul.f32 %v816, %v816
        %v977 = vmul.f32 %v817, %v817
        %v978 = vmul.f32 %v818, %v818
        %v979 = vmul.f32 %v819, %v819
        %v980 = vmul.f32 %v820, %v820
        %v981 = vmul.f32 %v821, %v821
        %v982 = vmul.f32 %v822, %v822
        %v983 = vmul.f32 %v823, %v823
        %v984 = vmul.f32 %v824, %v824
        %v985 = vmul.f32 %v825, %v825
        %v986 = vmul.f32 %v826, %v826
        %v987 = vmul.f32 %v827, %v827
        %v988 = vmul.f32 %v828, %v828
        %v989 = vsub.f32 %v925, %v957
        %v990 = vsub.f32 %v926, %v958
        %v991 = vsub.f32 %v927, %v959
        %v992 = vsub.f32 %v928, %v960
        %v993 = vsub.f32 %v929, %v961
        %v994 = vsub.f32 %v930, %v962
        %v995 = vsub.f32 %v931, %v963
        %v996 = vsub.f32 %v932, %v964
        %v997 = vsub.f32 %v933, %v965
        %v998 = vsub.f32 %v934, %v966
        %v999 = vsub.f32 %v935, %v967
        %v1000 = vsub.f32 %v936, %v968
        %v1001 = vsub.f32 %v937, %v969
        %v1002 = vsub.f32 %v938, %v970
        %v1003 = vsub.f32 %v939, %v971
        %v1004 = vsub.f32 %v940, %v972
        %v1005 = vsub.f32 %v941, %v973
        %v1006 = vsub.f32 %v942, %v974
        %v1007 = vsub.f32 %v943, %v975
        %v1008 = vsub.f32 %v944, %v976
        %v1009 = vsub.f32 %v945, %v977
        %v1010 = vsub.f32 %v946, %v978
        %v1011 = vsub.f32 %v947, %v979
        %v1012 = vsub.f32 %v948, %v980
        %v1013 = vsub.f32 %v949, %v981
        %v1014 = vsub.f32 %v950, %v982
        %v1015 = vsub.f32 %v951, %v983
        %v1016 = vsub.f32 %v952, %v984
        %v1017 = vsub.f32 %v953, %v985
        %v1018 = vsub.f32 %v954, %v986
        %v1019 = vsub.f32 %v955, %v987
        %v1020 = vsub.f32 %v956, %v988
        %v1021 = vsub.f32 %v574, %v797
        %v1022 = vsub.f32 %v579, %v798
        %v1023 = vsub.f32 %v584, %v799
        %v1024 = vsub.f32 %v589, %v800
        %v1025 = vsub.f32 %v594, %v801
        %v1026 = vsub.f32 %v599, %v802
        %v1027 = vsub.f32 %v604, %v803
        %v1028 = vsub.f32 %v609, %v804
        %v1029 = vsub.f32 %v614, %v805
        %v1030 = vsub.f32 %v619, %v806
        %v1031 = vsub.f32 %v624, %v807
        %v1032 = vsub.f32 %v629, %v808
        %v1033 = vsub.f32 %v634, %v809
        %v1034 = vsub.f32 %v639, %v810
        %v1035 = vsub.f32 %v644, %v811
        %v1036 = vsub.f32 %v649, %v812
        %v1037 = vsub.f32 %v654, %v813
        %v1038 = vsub.f32 %v659, %v814
        %v1039 = vsub.f32 %v664, %v815
        %v1040 = vsub.f32 %v669, %v816
        %v1041 = vsub.f32 %v674, %v817
        %v1042 = vsub.f32 %v679, %v818
        %v1043 = vsub.f32 %v684, %v819
        %v1044 = vsub.f32 %v689, %v820
        %v1045 = vsub.f32 %v694, %v821
        %v1046 = vsub.f32 %v699, %v822
        %v1047 = vsub.f32 %v704, %v823
        %v1048 = vsub.f32 %v709, %v824
        %v1049 = vsub.f32 %v714, %v825
        %v1050 = vsub.f32 %v719, %v826
        %v1051 = vsub.f32 %v724, %v827
        %v1052 = vsub.f32 %v729, %v828
        %v1053 = vadd.f32 %v989, 1e-12
        %v1054 = vadd.f32 %v990, 1e-12
        %v1055 = vadd.f32 %v991, 1e-12
        %v1056 = vadd.f32 %v992, 1e-12
        %v1057 = vadd.f32 %v993, 1e-12
        %v1058 = vadd.f32 %v994, 1e-12
        %v1059 = vadd.f32 %v995, 1e-12
        %v1060 = vadd.f32 %v996, 1e-12
        %v1061 = vadd.f32 %v997, 1e-12
        %v1062 = vadd.f32 %v998, 1e-12
        %v1063 = vadd.f32 %v999, 1e-12
        %v1064 = vadd.f32 %v1000, 1e-12
        %v1065 = vadd.f32 %v1001, 1e-12
        %v1066 = vadd.f32 %v1002, 1e-12
        %v1067 = vadd.f32 %v1003, 1e-12
        %v1068 = vadd.f32 %v1004, 1e-12
        %v1069 = vadd.f32 %v1005, 1e-12
        %v1070 = vadd.f32 %v1006, 1e-12
        %v1071 = vadd.f32 %v1007, 1e-12
        %v1072 = vadd.f32 %v1008, 1e-12
        %v1073 = vadd.f32 %v1009, 1e-12
        %v1074 = vadd.f32 %v1010, 1e-12
        %v1075 = vadd.f32 %v1011, 1e-12
        %v1076 = vadd.f32 %v1012, 1e-12
        %v1077 = vadd.f32 %v1013, 1e-12
        %v1078 = vadd.f32 %v1014, 1e-12
        %v1079 = vadd.f32 %v1015, 1e-12
        %v1080 = vadd.f32 %v1016, 1e-12
        %v1081 = vadd.f32 %v1017, 1e-12
        %v1082 = vadd.f32 %v1018, 1e-12
        %v1083 = vadd.f32 %v1019, 1e-12
        %v1084 = vadd.f32 %v1020, 1e-12
        %v1085 = vrsqrt.pop %v1053
        %v1086 = vrsqrt.pop %v1054
        %v1087 = vrsqrt.pop %v1055
        %v1088 = vrsqrt.pop %v1056
        %v1089 = vrsqrt.pop %v1057
        %v1090 = vrsqrt.pop %v1058
        %v1091 = vrsqrt.pop %v1059
        %v1092 = vrsqrt.pop %v1060
        %v1093 = vrsqrt.pop %v1061
        %v1094 = vrsqrt.pop %v1062
        %v1095 = vrsqrt.pop %v1063
        %v1096 = vrsqrt.pop %v1064
        %v1097 = vrsqrt.pop %v1065
        %v1098 = vrsqrt.pop %v1066
        %v1099 = vrsqrt.pop %v1067
        %v1100 = vrsqrt.pop %v1068
        %v1101 = vrsqrt.pop %v1069
        %v1102 = vrsqrt.pop %v1070
        %v1103 = vrsqrt.pop %v1071
        %v1104 = vrsqrt.pop %v1072
        %v1105 = vrsqrt.pop %v1073
        %v1106 = vrsqrt.pop %v1074
        %v1107 = vrsqrt.pop %v1075
        %v1108 = vrsqrt.pop %v1076
        %v1109 = vrsqrt.pop %v1077
        %v1110 = vrsqrt.pop %v1078
        %v1111 = vrsqrt.pop %v1079
        %v1112 = vrsqrt.pop %v1080
        %v1113 = vrsqrt.pop %v1081
        %v1114 = vrsqrt.pop %v1082
        %v1115 = vrsqrt.pop %v1083
        %v1116 = vrsqrt.pop %v1084
        %v1117 = vmul.f32 %v1021, %v1085
        %v1118 = vmul.f32 %v1022, %v1086
        %v1119 = vmul.f32 %v1023, %v1087
        %v1120 = vmul.f32 %v1024, %v1088
        %v1121 = vmul.f32 %v1025, %v1089
        %v1122 = vmul.f32 %v1026, %v1090
        %v1123 = vmul.f32 %v1027, %v1091
        %v1124 = vmul.f32 %v1028, %v1092
        %v1125 = vmul.f32 %v1029, %v1093
        %v1126 = vmul.f32 %v1030, %v1094
        %v1127 = vmul.f32 %v1031, %v1095
        %v1128 = vmul.f32 %v1032, %v1096
        %v1129 = vmul.f32 %v1033, %v1097
        %v1130 = vmul.f32 %v1034, %v1098
        %v1131 = vmul.f32 %v1035, %v1099
        %v1132 = vmul.f32 %v1036, %v1100
        %v1133 = vmul.f32 %v1037, %v1101
        %v1134 = vmul.f32 %v1038, %v1102
        %v1135 = vmul.f32 %v1039, %v1103
        %v1136 = vmul.f32 %v1040, %v1104
        %v1137 = vmul.f32 %v1041, %v1105
        %v1138 = vmul.f32 %v1042, %v1106
        %v1139 = vmul.f32 %v1043, %v1107
        %v1140 = vmul.f32 %v1044, %v1108
        %v1141 = vmul.f32 %v1045, %v1109
        %v1142 = vmul.f32 %v1046, %v1110
        %v1143 = vmul.f32 %v1047, %v1111
        %v1144 = vmul.f32 %v1048, %v1112
        %v1145 = vmul.f32 %v1049, %v1113
        %v1146 = vmul.f32 %v1050, %v1114
        %v1147 = vmul.f32 %v1051, %v1115
        %v1148 = vmul.f32 %v1052, %v1116
        %v1149 = vld [vmem:[%s3] sm:$0x1]
        %v1151 = vlaneseq
        %v1152 = vshrl.u32 %v1151, 7
        %v1153 = vsub.s32 0, %v1152
        %v1154 = vrot.slane %v1149, %v1153
        %v1156 = vmul.f32 %v1117, %v1154
        %v1157 = vmul.f32 %v1118, %v1154
        %v1158 = vmul.f32 %v1119, %v1154
        %v1159 = vmul.f32 %v1120, %v1154
        %v1160 = vmul.f32 %v1121, %v1154
        %v1161 = vmul.f32 %v1122, %v1154
        %v1162 = vmul.f32 %v1123, %v1154
        %v1163 = vmul.f32 %v1124, %v1154
        %v1164 = vmul.f32 %v1125, %v1154
        %v1165 = vmul.f32 %v1126, %v1154
        %v1166 = vmul.f32 %v1127, %v1154
        %v1167 = vmul.f32 %v1128, %v1154
        %v1168 = vmul.f32 %v1129, %v1154
        %v1169 = vmul.f32 %v1130, %v1154
        %v1170 = vmul.f32 %v1131, %v1154
        %v1171 = vmul.f32 %v1132, %v1154
        %v1172 = vmul.f32 %v1133, %v1154
        %v1173 = vmul.f32 %v1134, %v1154
        %v1174 = vmul.f32 %v1135, %v1154
        %v1175 = vmul.f32 %v1136, %v1154
        %v1176 = vmul.f32 %v1137, %v1154
        %v1177 = vmul.f32 %v1138, %v1154
        %v1178 = vmul.f32 %v1139, %v1154
        %v1179 = vmul.f32 %v1140, %v1154
        %v1180 = vmul.f32 %v1141, %v1154
        %v1181 = vmul.f32 %v1142, %v1154
        %v1182 = vmul.f32 %v1143, %v1154
        %v1183 = vmul.f32 %v1144, %v1154
        %v1184 = vmul.f32 %v1145, %v1154
        %v1185 = vmul.f32 %v1146, %v1154
        %v1186 = vmul.f32 %v1147, %v1154
        %v1187 = vmul.f32 %v1148, %v1154
        %v1188 = vld [vmem:[%s4] sm:$0x1]
        %v1190 = vlaneseq
        %v1191 = vshrl.u32 %v1190, 7
        %v1192 = vsub.s32 0, %v1191
        %v1193 = vrot.slane %v1188, %v1192
        %v1195 = vadd.f32 %v1156, %v1193
        %v1196 = vadd.f32 %v1157, %v1193
        %v1197 = vadd.f32 %v1158, %v1193
        %v1198 = vadd.f32 %v1159, %v1193
        %v1199 = vadd.f32 %v1160, %v1193
        %v1200 = vadd.f32 %v1161, %v1193
        %v1201 = vadd.f32 %v1162, %v1193
        %v1202 = vadd.f32 %v1163, %v1193
        %v1203 = vadd.f32 %v1164, %v1193
        %v1204 = vadd.f32 %v1165, %v1193
        %v1205 = vadd.f32 %v1166, %v1193
        %v1206 = vadd.f32 %v1167, %v1193
        %v1207 = vadd.f32 %v1168, %v1193
        %v1208 = vadd.f32 %v1169, %v1193
        %v1209 = vadd.f32 %v1170, %v1193
        %v1210 = vadd.f32 %v1171, %v1193
        %v1211 = vadd.f32 %v1172, %v1193
        %v1212 = vadd.f32 %v1173, %v1193
        %v1213 = vadd.f32 %v1174, %v1193
        %v1214 = vadd.f32 %v1175, %v1193
        %v1215 = vadd.f32 %v1176, %v1193
        %v1216 = vadd.f32 %v1177, %v1193
        %v1217 = vadd.f32 %v1178, %v1193
        %v1218 = vadd.f32 %v1179, %v1193
        %v1219 = vadd.f32 %v1180, %v1193
        %v1220 = vadd.f32 %v1181, %v1193
        %v1221 = vadd.f32 %v1182, %v1193
        %v1222 = vadd.f32 %v1183, %v1193
        %v1223 = vadd.f32 %v1184, %v1193
        %v1224 = vadd.f32 %v1185, %v1193
        %v1225 = vadd.f32 %v1186, %v1193
        %v1226 = vadd.f32 %v1187, %v1193
        %1227 = vst [vmem:[%s269] sm:$0xff] %v1195
        %1228 = vst [vmem:[%s269 + $0x8] sm:$0xff] %v1196
        %1229 = vst [vmem:[%s269 + $0x10] sm:$0xff] %v1197
        %1230 = vst [vmem:[%s269 + $0x18] sm:$0xff] %v1198
        %1231 = vst [vmem:[%s269 + $0x20] sm:$0xff] %v1199
        %1232 = vst [vmem:[%s269 + $0x28] sm:$0xff] %v1200
        %1233 = vst [vmem:[%s269 + $0x30] sm:$0xff] %v1201
        %1234 = vst [vmem:[%s269 + $0x38] sm:$0xff] %v1202
        %1235 = vst [vmem:[%s269 + $0x40] sm:$0xff] %v1203
        %1236 = vst [vmem:[%s269 + $0x48] sm:$0xff] %v1204
        %1237 = vst [vmem:[%s269 + $0x50] sm:$0xff] %v1205
        %1238 = vst [vmem:[%s269 + $0x58] sm:$0xff] %v1206
        %1239 = vst [vmem:[%s269 + $0x60] sm:$0xff] %v1207
        %1240 = vst [vmem:[%s269 + $0x68] sm:$0xff] %v1208
        %1241 = vst [vmem:[%s269 + $0x70] sm:$0xff] %v1209
        %1242 = vst [vmem:[%s269 + $0x78] sm:$0xff] %v1210
        %1243 = vst [vmem:[%s269 + $0x80] sm:$0xff] %v1211
        %1244 = vst [vmem:[%s269 + $0x88] sm:$0xff] %v1212
        %1245 = vst [vmem:[%s269 + $0x90] sm:$0xff] %v1213
        %1246 = vst [vmem:[%s269 + $0x98] sm:$0xff] %v1214
        %1247 = vst [vmem:[%s269 + $0xa0] sm:$0xff] %v1215
        %1248 = vst [vmem:[%s269 + $0xa8] sm:$0xff] %v1216
        %1249 = vst [vmem:[%s269 + $0xb0] sm:$0xff] %v1217
        %1250 = vst [vmem:[%s269 + $0xb8] sm:$0xff] %v1218
        %1251 = vst [vmem:[%s269 + $0xc0] sm:$0xff] %v1219
        %1252 = vst [vmem:[%s269 + $0xc8] sm:$0xff] %v1220
        %1253 = vst [vmem:[%s269 + $0xd0] sm:$0xff] %v1221
        %1254 = vst [vmem:[%s269 + $0xd8] sm:$0xff] %v1222
        %1255 = vst [vmem:[%s269 + $0xe0] sm:$0xff] %v1223
        %1256 = vst [vmem:[%s269 + $0xe8] sm:$0xff] %v1224
        %1257 = vst [vmem:[%s269 + $0xf0] sm:$0xff] %v1225
        %1258 = vst [vmem:[%s269 + $0xf8] sm:$0xff] %v1226
        %s1259 = sand.u32 %s141, 1
        %s1260 = scalar_lea.sflag [#allocation4], %s1259
        %s1261 = sand.u32 %s141, 1
        %s1262 = smul.addr %s1261, 256
        %s1263 = scalar_lea.vmem [#allocation8], %s1262
        // Predicated region
        $region53: #{tpu_custom_call.1} parent=39 // pred_check
          %p1264 = pneg %p151
        $region54: #{tpu_custom_call.1} parent=39 // pred_check_branch
          %1266 = sbr.rel (%p1264) target = $region56
        $region55: #{tpu_custom_call.1} parent=39 // pred_region
          %s1267 = smul.u32 32, %s23
          %s1269 = ssub.s32 4096, 4096
          %1270 = vsyncadd %s1260, %s1269
          %s1271 = smul.addr %s1267, 128
          %s1272 = scalar_lea.hbm %s5, %s1271
          %s1273 = sshll.u32 %s1263, 4
          %s1274 = int_to_ptr.vmem [resolvable:$true] %s1273
          %1279 = dma.vmem_to_hbm [thread:$0]  %s1274, 4096, %s1272, %s1260, 128, 128, 8
        $region56: #{tpu_custom_call.1} parent=39 // pred_fallthru
          _
      $region40: #{tpu_custom_call.1} parent=5 // pred_fallthru
        _
      %p1280 = scmp.le.s32.totalorder 2, %s18
      // Predicated region
      $region57: #{tpu_custom_call.1} parent=5 // pred_check
        %p1281 = pneg %p1280
      $region58: #{tpu_custom_call.1} parent=5 // pred_check_branch
        %1283 = sbr.rel (%p1281) target = $region60
      $region59: #{tpu_custom_call.1} parent=5 // pred_region
        %s1284 = ssub.s32 %s18, 2
        // Predicated region
        $region61: #{tpu_custom_call.1} parent=59 // pred_check
          %p1285 = pneg %p157
        $region62: #{tpu_custom_call.1} parent=59 // pred_check_branch
          %1287 = sbr.rel (%p1285) target = $region64
        $region63: #{tpu_custom_call.1} parent=59 // pred_region
          %s1288 = sand.u32 %s142, 1
          %s1289 = scalar_lea.sflag [#allocation4], %s1288
          %s1290 = sand.u32 %s142, 1
          %s1291 = smul.addr %s1290, 256
          %s1292 = scalar_lea.vmem [#allocation8], %s1291
          %1293 = dma.done %s1289, 4096
        $region64: #{tpu_custom_call.1} parent=59 // pred_fallthru
          _
      $region60: #{tpu_custom_call.1} parent=5 // pred_fallthru
        _
    $region6: #{tpu_custom_call.1} parent=1 // loop_footer
      %s22 = sadd.s32 1, %s18
    $region7: #{tpu_custom_call.1} parent=1 // loop_footer_branch
      %17 = sbr.rel target = $region3
    $region8: #{tpu_custom_call.1} parent=1 // loop_exit
      _
    %1294 = vsyncpa [#allocation3], 1
    %s1295 = scalar_lea.sflag [#allocation3], 1
    %1296 = vsyncpa %s1295, 1
    %1297 = vsyncpa [#allocation6], 1
    %1298 = vsyncpa [#allocation4], 1
    %s1299 = scalar_lea.sflag [#allocation4], 1
    %1300 = vsyncpa %s1299, 1

</llo_original>
